<compile_context>
chip_gen: v7x
topology: tpu7x:2x2x1
jax: 0.10.0
libtpu: 0.0.40
codegen_flags: <defaults>
</compile_context>

<pallas_src>
import functools
from typing import NamedTuple

import jax
import jax.numpy as jnp
from jax.experimental import pallas as pl
from jax.experimental.pallas import tpu as pltpu


def qnetwork_kernel(state_ref, w1_ref, b1_ref, w2_ref, b2_ref, w3_ref, b3_ref,
                    phi_ref, q_ref):
    # fc1 + relu (MXU in compute dtype, f32 accumulation).
    h1 = jnp.dot(state_ref[...], w1_ref[...], preferred_element_type=jnp.float32)
    phi = jnp.maximum(h1 + b1_ref[...], 0.0)                 # (TB, F1p) + (1, F1p)

    # F.normalize(p=2, dim=1): phi / max(||phi||, 1e-12) == phi * rsqrt(max(ssq, 1e-24)).
    # Zero-padded rows: ssq == 0 -> clamped to 1e-24 -> phi_n == 0 (exact). Keep the clamp.
    ssq = jnp.sum(phi * phi, axis=1, keepdims=True)
    phi_n = phi * jax.lax.rsqrt(jnp.maximum(ssq, 1e-24))      # EUP rsqrt (few-ULP approx)
    phi_ref[...] = phi_n.astype(phi_ref.dtype)

    # fc2 + relu (cast the activation operand to the weight compute dtype for the MXU).
    h2 = jnp.dot(phi_n.astype(w2_ref.dtype), w2_ref[...],
                 preferred_element_type=jnp.float32)
    h2 = jnp.maximum(h2 + b2_ref[...], 0.0)

    # fc3 (no activation); 128-col padded output keeps the store lane-dense.
    q = jnp.dot(h2.astype(w3_ref.dtype), w3_ref[...],
                preferred_element_type=jnp.float32) + b3_ref[...]
    q_ref[...] = q.astype(q_ref.dtype)


def _round_up(n, m):
    return ((n + m - 1) // m) * m


def _pad_axis(x, axis, target):
    pad = target - x.shape[axis]
    if pad <= 0:
        return x
    widths = [(0, 0)] * x.ndim
    widths[axis] = (0, pad)
    return jnp.pad(x, widths)


class QNetDims(NamedTuple):
    S: int
    F1: int
    F2: int
    A: int
    Sp: int
    F1p: int
    F2p: int
    Ap: int


def prepare_qnetwork_params(w1, b1, w2, b2, w3, b3, *, compute_dtype=jnp.bfloat16):
    """Pad feature dims to multiples of 128 and cast weights to the MXU compute dtype.

    Call ONCE and reuse across forward calls (hoists ~200 KiB of per-call pad/cast
    traffic out of the hot path).  compute_dtype=jnp.bfloat16 is recommended on
    v5e/v6e/v7x alike (all MXUs are bf16-native; halves weight/activation DMA bytes);
    use jnp.float32 for tight parity with the f32 PyTorch module.  Biases stay f32
    because bias/ReLU/normalize always run in f32 inside the kernel.
    """
    S, F1 = w1.shape
    F2 = w2.shape[1]
    A = w3.shape[1]
    Sp, F1p, F2p, Ap = (_round_up(d, 128) for d in (S, F1, F2, A))

    b1 = jnp.asarray(b1).reshape(1, -1)
    b2 = jnp.asarray(b2).reshape(1, -1)
    b3 = jnp.asarray(b3).reshape(1, -1)

    params = (
        _pad_axis(_pad_axis(w1, 0, Sp), 1, F1p).astype(compute_dtype),
        _pad_axis(b1, 1, F1p).astype(jnp.float32),
        _pad_axis(_pad_axis(w2, 0, F1p), 1, F2p).astype(compute_dtype),
        _pad_axis(b2, 1, F2p).astype(jnp.float32),
        _pad_axis(_pad_axis(w3, 0, F2p), 1, Ap).astype(compute_dtype),
        _pad_axis(b3, 1, Ap).astype(jnp.float32),
    )
    dims = QNetDims(S, F1, F2, A, Sp, F1p, F2p, Ap)
    return params, dims


@functools.partial(jax.jit, static_argnames=("dims", "out_dtype", "tb_max"))
def qnetwork_forward(state, params, dims, *, out_dtype=None, tb_max=2048):
    """Returns (phi, q) matching the PyTorch module's forward.

    `params` must come from prepare_qnetwork_params (pre-padded / pre-cast).
    out_dtype: dtype of the phi/q HBM outputs; defaults to the compute dtype
    (bf16 outputs halve the dominant writeback stream of this HBM-bound net).
    """
    w1_p, b1_p, w2_p, b2_p, w3_p, b3_p = params
    compute_dtype = w1_p.dtype
    if out_dtype is None:
        out_dtype = compute_dtype
    out_dtype = jnp.dtype(out_dtype)

    B, S = state.shape
    assert S == dims.S, f"state feature dim {S} != prepared {dims.S}"

    # Row alignment: bf16 packs 2 rows per sublane -> (16,128) tiles; f32 -> (8,128).
    row_align = 16 if jnp.dtype(compute_dtype).itemsize < 4 else 8
    b_al = _round_up(B, row_align)
    # Aim for >= 2 grid steps on moderate batches so ("parallel",) engages both v7x
    # TensorCores; cap at tb_max.  VMEM headroom is huge even at TB=2048, so no
    # per-generation tile shrink.
    tb = min(int(tb_max), max(row_align, _round_up(pl.cdiv(b_al, 2), row_align)))
    bp = _round_up(b_al, tb)
    grid = (bp // tb,)

    # Per-call state pad/cast is unavoidable (and tiny); weights were prepared once.
    state_p = _pad_axis(_pad_axis(state, 1, dims.Sp), 0, bp).astype(compute_dtype)

    def act_spec(feat):
        return pl.BlockSpec((tb, feat), lambda i: (i, 0))

    def res_spec(shape):
        # Constant index_map: weight/bias stays VMEM-resident, DMA'd once per call.
        return pl.BlockSpec(shape, lambda i: (0, 0))

    cbytes = jnp.dtype(compute_dtype).itemsize
    weight_elems = dims.Sp * dims.F1p + dims.F1p * dims.F2p + dims.F2p * dims.Ap
    cost = pl.CostEstimate(
        flops=2 * bp * weight_elems,
        transcendentals=bp,  # one rsqrt per row
        bytes_accessed=(bp * dims.Sp * cbytes
                        + weight_elems * cbytes
                        + (dims.F1p + dims.F2p + dims.Ap) * 4
                        + bp * (dims.F1p + dims.Ap) * out_dtype.itemsize),
    )

    phi_p, q_p = pl.pallas_call(
        qnetwork_kernel,
        out_shape=(
            jax.ShapeDtypeStruct((bp, dims.F1p), out_dtype),
            jax.ShapeDtypeStruct((bp, dims.Ap), out_dtype),
        ),
        grid=grid,
        in_specs=[
            act_spec(dims.Sp),
            res_spec((dims.Sp, dims.F1p)), res_spec((1, dims.F1p)),
            res_spec((dims.F1p, dims.F2p)), res_spec((1, dims.F2p)),
            res_spec((dims.F2p, dims.Ap)), res_spec((1, dims.Ap)),
        ],
        out_specs=(
            act_spec(dims.F1p),
            act_spec(dims.Ap),
        ),
        compiler_params=pltpu.CompilerParams(
            dimension_semantics=("parallel",),
        ),
        cost_estimate=cost,
    )(state_p, w1_p, b1_p, w2_p, b2_p, w3_p, b3_p)

    # Slice away the zero padding (rows and feature columns).
    return phi_p[:B, :dims.F1], q_p[:B, :dims.A]


def init_linear(key, in_features, out_features):
    # PyTorch nn.Linear default init: U(-k, k), k = 1/sqrt(in_features).
    kw, kb = jax.random.split(key)
    bound = 1.0 / jnp.sqrt(jnp.float32(in_features))
    # Stored as (in, out) so the kernel computes x @ W.
    w = jax.random.uniform(kw, (in_features, out_features), jnp.float32, -bound, bound)
    b = jax.random.uniform(kb, (1, out_features), jnp.float32, -bound, bound)
    return w, b


def reference_forward(state, w1, b1, w2, b2, w3, b3):
    h1 = jnp.maximum(state @ w1 + b1, 0.0)
    phi = h1 / jnp.maximum(jnp.linalg.norm(h1, axis=1, keepdims=True), 1e-12)
    h2 = jnp.maximum(phi @ w2 + b2, 0.0)
    q = h2 @ w3 + b3
    return phi, q


if __name__ == "__main__":
    state_size = 32
    action_size = 4
    fc1_units = 128
    fc2_units = 64
    batch = 8

    key = jax.random.PRNGKey(0)
    k_in, k1, k2, k3 = jax.random.split(key, 4)

    state = jax.random.normal(k_in, (batch, state_size), jnp.float32)
    w1, b1 = init_linear(k1, state_size, fc1_units)
    w2, b2 = init_linear(k2, fc1_units, fc2_units)
    w3, b3 = init_linear(k3, fc2_units, action_size)

    # --- f32 path (exact module semantics); params prepared once and reused ---
    params_f32, dims = prepare_qnetwork_params(w1, b1, w2, b2, w3, b3,
                                               compute_dtype=jnp.float32)
    phi, q = qnetwork_forward(state, params_f32, dims=dims, out_dtype=jnp.float32)
    jax.block_until_ready((phi, q))

    phi_ref, q_ref = reference_forward(state, w1, b1, w2, b2, w3, b3)
    assert phi.shape == (batch, fc1_units) and q.shape == (batch, action_size)
    assert jnp.allclose(phi, phi_ref, atol=1e-5, rtol=1e-5)
    assert jnp.allclose(q, q_ref, atol=1e-5, rtol=1e-5)

    # Second call hits the jit cache and reuses the prepared params (no re-pad/re-cast).
    phi_b, q_b = qnetwork_forward(state, params_f32, dims=dims, out_dtype=jnp.float32)
    jax.block_until_ready((phi_b, q_b))
    assert bool(jnp.array_equal(phi_b, phi)) and bool(jnp.array_equal(q_b, q))

    # --- bf16 MXU + bf16 outputs (recommended perf path on v5e/v6e/v7x); batch chosen
    #     so the grid has 2 steps (exercises pipelining / megacore sharding) ---
    batch2 = 40
    state2 = jax.random.normal(jax.random.PRNGKey(1), (batch2, state_size), jnp.float32)
    params_bf16, dims_b = prepare_qnetwork_params(w1, b1, w2, b2, w3, b3,
                                                  compute_dtype=jnp.bfloat16)
    phi2, q2 = qnetwork_forward(state2, params_bf16, dims=dims_b)  # out_dtype -> bf16
    jax.block_until_ready((phi2, q2))

    phi2_ref, q2_ref = reference_forward(state2, w1, b1, w2, b2, w3, b3)
    assert phi2.shape == (batch2, fc1_units) and q2.shape == (batch2, action_size)
    assert jnp.allclose(phi2.astype(jnp.float32), phi2_ref, atol=5e-2, rtol=5e-2)
    assert jnp.allclose(q2.astype(jnp.float32), q2_ref, atol=5e-2, rtol=5e-2)

    print("KERNEL_OK")
</pallas_src>

<mosaic_0001>
module attributes {stable_mosaic.version = 11 : i64} {
  func.func @qnetwork_kernel(%arg0: i32, %arg1: memref<8x128xf32, #tpu.memory_space<vmem>>, %arg2: memref<128x128xf32, #tpu.memory_space<vmem>>, %arg3: memref<1x128xf32, #tpu.memory_space<vmem>>, %arg4: memref<128x128xf32, #tpu.memory_space<vmem>>, %arg5: memref<1x128xf32, #tpu.memory_space<vmem>>, %arg6: memref<128x128xf32, #tpu.memory_space<vmem>>, %arg7: memref<1x128xf32, #tpu.memory_space<vmem>>, %arg8: memref<8x128xf32, #tpu.memory_space<vmem>>, %arg9: memref<8x128xf32, #tpu.memory_space<vmem>>) attributes {dimension_semantics = [#tpu.dimension_semantics<parallel>], iteration_bounds = array<i64: 1>, scalar_prefetch = 0 : i64, scratch_operands = 0 : i64, tpu.core_type = #tpu.core_type<tc>, window_params = [{transform_indices = @transform_0, window_bounds = array<i64: 8, 128>}, {pipeline_mode = #tpu.pipeline_mode<synchronous>, transform_indices = @transform_1, window_bounds = array<i64: 128, 128>}, {pipeline_mode = #tpu.pipeline_mode<synchronous>, transform_indices = @transform_2, window_bounds = array<i64: 1, 128>}, {pipeline_mode = #tpu.pipeline_mode<synchronous>, transform_indices = @transform_3, window_bounds = array<i64: 128, 128>}, {pipeline_mode = #tpu.pipeline_mode<synchronous>, transform_indices = @transform_4, window_bounds = array<i64: 1, 128>}, {pipeline_mode = #tpu.pipeline_mode<synchronous>, transform_indices = @transform_5, window_bounds = array<i64: 128, 128>}, {pipeline_mode = #tpu.pipeline_mode<synchronous>, transform_indices = @transform_6, window_bounds = array<i64: 1, 128>}, {transform_indices = @transform_7, window_bounds = array<i64: 8, 128>}, {transform_indices = @transform_8, window_bounds = array<i64: 8, 128>}]} {
    %c0 = arith.constant 0 : index
    %c0_0 = arith.constant 0 : index
    %0 = vector.load %arg1[%c0, %c0_0] : memref<8x128xf32, #tpu.memory_space<vmem>>, vector<8x128xf32>
    %c0_1 = arith.constant 0 : index
    %c0_2 = arith.constant 0 : index
    %1 = vector.load %arg2[%c0_1, %c0_2] : memref<128x128xf32, #tpu.memory_space<vmem>>, vector<128x128xf32>
    %cst = arith.constant dense<0.000000e+00> : vector<8x128xf32>
    %2 = tpu.matmul %0, %1, %cst {dimension_numbers = #tpu.dot_dimension_numbers<[1], [0], [0], [1], [0, 0, 1, 1], [], []>} : vector<8x128xf32>, vector<128x128xf32>, vector<8x128xf32> -> vector<8x128xf32>
    %c0_3 = arith.constant 0 : index
    %c0_4 = arith.constant 0 : index
    %3 = vector.load %arg3[%c0_3, %c0_4] : memref<1x128xf32, #tpu.memory_space<vmem>>, vector<1x128xf32>
    %4 = vector.broadcast %3 : vector<1x128xf32> to vector<8x128xf32>
    %5 = arith.addf %2, %4 : vector<8x128xf32>
    %cst_5 = arith.constant 0.000000e+00 : f32
    %6 = vector.broadcast %cst_5 : f32 to vector<8x128xf32>
    %7 = arith.maximumf %5, %6 : vector<8x128xf32>
    %8 = arith.mulf %7, %7 : vector<8x128xf32>
    %cst_6 = arith.constant dense<0.000000e+00> : vector<8xf32>
    %9 = vector.multi_reduction <add>, %8, %cst_6 [1] : vector<8x128xf32> to vector<8xf32>
    %10 = vector.shape_cast %9 : vector<8xf32> to vector<8x1xf32>
    %cst_7 = arith.constant 1.000000e-24 : f32
    %11 = vector.broadcast %cst_7 : f32 to vector<8x1xf32>
    %12 = arith.maximumf %10, %11 : vector<8x1xf32>
    %13 = math.rsqrt %12 : vector<8x1xf32>
    %14 = vector.broadcast %13 : vector<8x1xf32> to vector<8x128xf32>
    %15 = arith.mulf %7, %14 : vector<8x128xf32>
    %c0_8 = arith.constant 0 : index
    %c0_9 = arith.constant 0 : index
    %16 = vector.load %arg8[%c0_8, %c0_9] : memref<8x128xf32, #tpu.memory_space<vmem>>, vector<8x128xf32>
    tpu.vector_store %arg8[%c0_8, %c0_9], %15 {strides = array<i32>} : memref<8x128xf32, #tpu.memory_space<vmem>>, vector<8x128xf32>,
    %c0_10 = arith.constant 0 : index
    %c0_11 = arith.constant 0 : index
    %17 = vector.load %arg4[%c0_10, %c0_11] : memref<128x128xf32, #tpu.memory_space<vmem>>, vector<128x128xf32>
    %cst_12 = arith.constant dense<0.000000e+00> : vector<8x128xf32>
    %18 = tpu.matmul %15, %17, %cst_12 {dimension_numbers = #tpu.dot_dimension_numbers<[1], [0], [0], [1], [0, 0, 1, 1], [], []>} : vector<8x128xf32>, vector<128x128xf32>, vector<8x128xf32> -> vector<8x128xf32>
    %c0_13 = arith.constant 0 : index
    %c0_14 = arith.constant 0 : index
    %19 = vector.load %arg5[%c0_13, %c0_14] : memref<1x128xf32, #tpu.memory_space<vmem>>, vector<1x128xf32>
    %20 = vector.broadcast %19 : vector<1x128xf32> to vector<8x128xf32>
    %21 = arith.addf %18, %20 : vector<8x128xf32>
    %cst_15 = arith.constant 0.000000e+00 : f32
    %22 = vector.broadcast %cst_15 : f32 to vector<8x128xf32>
    %23 = arith.maximumf %21, %22 : vector<8x128xf32>
    %c0_16 = arith.constant 0 : index
    %c0_17 = arith.constant 0 : index
    %24 = vector.load %arg6[%c0_16, %c0_17] : memref<128x128xf32, #tpu.memory_space<vmem>>, vector<128x128xf32>
    %cst_18 = arith.constant dense<0.000000e+00> : vector<8x128xf32>
    %25 = tpu.matmul %23, %24, %cst_18 {dimension_numbers = #tpu.dot_dimension_numbers<[1], [0], [0], [1], [0, 0, 1, 1], [], []>} : vector<8x128xf32>, vector<128x128xf32>, vector<8x128xf32> -> vector<8x128xf32>
    %c0_19 = arith.constant 0 : index
    %c0_20 = arith.constant 0 : index
    %26 = vector.load %arg7[%c0_19, %c0_20] : memref<1x128xf32, #tpu.memory_space<vmem>>, vector<1x128xf32>
    %27 = vector.broadcast %26 : vector<1x128xf32> to vector<8x128xf32>
    %28 = arith.addf %25, %27 : vector<8x128xf32>
    %c0_21 = arith.constant 0 : index
    %c0_22 = arith.constant 0 : index
    %29 = vector.load %arg9[%c0_21, %c0_22] : memref<8x128xf32, #tpu.memory_space<vmem>>, vector<8x128xf32>
    tpu.vector_store %arg9[%c0_21, %c0_22], %28 {strides = array<i32>} : memref<8x128xf32, #tpu.memory_space<vmem>>, vector<8x128xf32>,
    return
  }
  func.func @transform_0(%arg0: i32) -> (i32, i32) {
    %c0_i32 = arith.constant 0 : i32
    %c0_i32_0 = arith.constant 0 : i32
    return %arg0, %c0_i32 : i32, i32
  }
  func.func @transform_1(%arg0: i32) -> (i32, i32) {
    %c0_i32 = arith.constant 0 : i32
    %c0_i32_0 = arith.constant 0 : i32
    %c0_i32_1 = arith.constant 0 : i32
    return %c0_i32, %c0_i32_0 : i32, i32
  }
  func.func @transform_2(%arg0: i32) -> (i32, i32) {
    %c0_i32 = arith.constant 0 : i32
    %c0_i32_0 = arith.constant 0 : i32
    %c0_i32_1 = arith.constant 0 : i32
    return %c0_i32, %c0_i32_0 : i32, i32
  }
  func.func @transform_3(%arg0: i32) -> (i32, i32) {
    %c0_i32 = arith.constant 0 : i32
    %c0_i32_0 = arith.constant 0 : i32
    %c0_i32_1 = arith.constant 0 : i32
    return %c0_i32, %c0_i32_0 : i32, i32
  }
  func.func @transform_4(%arg0: i32) -> (i32, i32) {
    %c0_i32 = arith.constant 0 : i32
    %c0_i32_0 = arith.constant 0 : i32
    %c0_i32_1 = arith.constant 0 : i32
    return %c0_i32, %c0_i32_0 : i32, i32
  }
  func.func @transform_5(%arg0: i32) -> (i32, i32) {
    %c0_i32 = arith.constant 0 : i32
    %c0_i32_0 = arith.constant 0 : i32
    %c0_i32_1 = arith.constant 0 : i32
    return %c0_i32, %c0_i32_0 : i32, i32
  }
  func.func @transform_6(%arg0: i32) -> (i32, i32) {
    %c0_i32 = arith.constant 0 : i32
    %c0_i32_0 = arith.constant 0 : i32
    %c0_i32_1 = arith.constant 0 : i32
    return %c0_i32, %c0_i32_0 : i32, i32
  }
  func.func @transform_7(%arg0: i32) -> (i32, i32) {
    %c0_i32 = arith.constant 0 : i32
    %c0_i32_0 = arith.constant 0 : i32
    return %arg0, %c0_i32 : i32, i32
  }
  func.func @transform_8(%arg0: i32) -> (i32, i32) {
    %c0_i32 = arith.constant 0 : i32
    %c0_i32_0 = arith.constant 0 : i32
    return %arg0, %c0_i32 : i32, i32
  }
}

</mosaic_0001>

<llo_original>
// kernel: qnetwork_forward.1
$region0: #{qnetwork_forward.1}
  #allocation0 [shape = 'u32[]', space=smem, size = 0x4, offset = 0x4, fixed_abs, tag = 'smem constant byte address 0x4 - core index']
  #allocation1 [shape = 'u32[144,128]{1,0:T(1,128)}', space=vmem, size = 0x12000, scoped, tag = 'internal scratch']
  %s0 = inlined_call_operand.vmem [shape: f32[8,128], index: 0, kind: input, shape index: {}]
  %s1 = inlined_call_operand.hbm [shape: f32[128,128], index: 1, kind: input, shape index: {}]
  %s2 = inlined_call_operand.vmem [shape: f32[1,128], index: 2, kind: input, shape index: {}]
  %s3 = inlined_call_operand.hbm [shape: f32[128,128], index: 3, kind: input, shape index: {}]
  %s4 = inlined_call_operand.vmem [shape: f32[1,128], index: 4, kind: input, shape index: {}]
  %s5 = inlined_call_operand.hbm [shape: f32[128,128], index: 5, kind: input, shape index: {}]
  %s6 = inlined_call_operand.vmem [shape: f32[1,128], index: 6, kind: input, shape index: {}]
  %s7 = inlined_call_operand.hbm [shape: f32[8,128], index: 7, kind: output, shape index: {0}]
  %s8 = inlined_call_operand.vmem [shape: f32[8,128], index: 8, kind: output, shape index: {1}]
  %9 = xla_tuple %s7, %s8
  %s10 = sld [smem:[#allocation0]]
  $region58: #{qnetwork_forward.1} parent=0
    _
  %s12 = ssub.s32 1, %s10
  %s13 = scalar_select 0, %s12, %s10
  $region1: #{qnetwork_forward.1} parent=0
    #allocation2 [shape = 'u8[65536]{0}', space=vmem, size = 0x10000, scoped, tag = 'input window, operand 1, single buffered']
    #allocation3 [shape = 's32[1]{0}', space=sflag, size = 0x4, scoped, tag = 'scoped memory for qnetwork_forward.1']
    #allocation4 [shape = 's32[1]{0}', space=sflag, size = 0x4, scoped, tag = 'scoped memory for qnetwork_forward.1']
    #allocation5 [shape = 'u8[65536]{0}', space=vmem, size = 0x10000, scoped, tag = 'input window, operand 3, single buffered']
    #allocation6 [shape = 's32[1]{0}', space=sflag, size = 0x4, scoped, tag = 'scoped memory for qnetwork_forward.1']
    #allocation7 [shape = 'u8[65536]{0}', space=vmem, size = 0x10000, scoped, tag = 'input window, operand 5, single buffered']
    #allocation8 [shape = 'u8[4096]{0}', space=vmem, size = 0x1000, scoped, tag = 'output window, operand 0, single buffered']
    %14 = vsyncpa [#allocation3], 0
    %15 = vsyncpa [#allocation6], 0
    %16 = vsyncpa [#allocation4], 0
    // Predicated region
    $region2: #{qnetwork_forward.1} parent=1 // pred_check
      _
    $region3: #{qnetwork_forward.1} parent=1 // pred_check_branch
      %18 = sbr.rel (0) target = $region5
    $region4: #{qnetwork_forward.1} parent=1 // pred_region
      _
    $region5: #{qnetwork_forward.1} parent=1 // pred_fallthru
      _
    // Predicated region
    $region6: #{qnetwork_forward.1} parent=1 // pred_check
      _
    $region7: #{qnetwork_forward.1} parent=1 // pred_check_branch
      %20 = sbr.rel (0) target = $region9
    $region8: #{qnetwork_forward.1} parent=1 // pred_region
      %s22 = ssub.s32 2048, 2048
      %23 = vsyncadd [#allocation3], %s22
      %s24 = sshll.u32 [#allocation2], 4
      %s25 = int_to_ptr.vmem [resolvable:$true] %s24
      %30 = dma.hbm_to_vmem [thread:$0]  %s1, 2048, %s25, [#allocation3], 128, 128, 8
    $region9: #{qnetwork_forward.1} parent=1 // pred_fallthru
      _
    // Predicated region
    $region10: #{qnetwork_forward.1} parent=1 // pred_check
      _
    $region11: #{qnetwork_forward.1} parent=1 // pred_check_branch
      %32 = sbr.rel (0) target = $region13
    $region12: #{qnetwork_forward.1} parent=1 // pred_region
      _
    $region13: #{qnetwork_forward.1} parent=1 // pred_fallthru
      _
    // Predicated region
    $region14: #{qnetwork_forward.1} parent=1 // pred_check
      _
    $region15: #{qnetwork_forward.1} parent=1 // pred_check_branch
      %34 = sbr.rel (0) target = $region17
    $region16: #{qnetwork_forward.1} parent=1 // pred_region
      %s36 = ssub.s32 2048, 2048
      %37 = vsyncadd [#allocation6], %s36
      %s38 = sshll.u32 [#allocation5], 4
      %s39 = int_to_ptr.vmem [resolvable:$true] %s38
      %44 = dma.hbm_to_vmem [thread:$0]  %s3, 2048, %s39, [#allocation6], 128, 128, 8
    $region17: #{qnetwork_forward.1} parent=1 // pred_fallthru
      _
    // Predicated region
    $region18: #{qnetwork_forward.1} parent=1 // pred_check
      _
    $region19: #{qnetwork_forward.1} parent=1 // pred_check_branch
      %46 = sbr.rel (0) target = $region21
    $region20: #{qnetwork_forward.1} parent=1 // pred_region
      _
    $region21: #{qnetwork_forward.1} parent=1 // pred_fallthru
      _
    // Predicated region
    $region22: #{qnetwork_forward.1} parent=1 // pred_check
      _
    $region23: #{qnetwork_forward.1} parent=1 // pred_check_branch
      %48 = sbr.rel (0) target = $region25
    $region24: #{qnetwork_forward.1} parent=1 // pred_region
      %s50 = ssub.s32 2048, 2048
      %51 = vsyncadd [#allocation6], %s50
      %s52 = sshll.u32 [#allocation7], 4
      %s53 = int_to_ptr.vmem [resolvable:$true] %s52
      %58 = dma.hbm_to_vmem [thread:$0]  %s5, 2048, %s53, [#allocation6], 128, 128, 8
    $region25: #{qnetwork_forward.1} parent=1 // pred_fallthru
      _
    // Predicated region
    $region26: #{qnetwork_forward.1} parent=1 // pred_check
      _
    $region27: #{qnetwork_forward.1} parent=1 // pred_check_branch
      %60 = sbr.rel (0) target = $region29
    $region28: #{qnetwork_forward.1} parent=1 // pred_region
      _
    $region29: #{qnetwork_forward.1} parent=1 // pred_fallthru
      _
    // Predicated region
    $region30: #{qnetwork_forward.1} parent=1 // pred_check
      _
    $region31: #{qnetwork_forward.1} parent=1 // pred_check_branch
      %62 = sbr.rel (0) target = $region33
    $region32: #{qnetwork_forward.1} parent=1 // pred_region
      %63 = dma.done [#allocation3], 2048
    $region33: #{qnetwork_forward.1} parent=1 // pred_fallthru
      _
    // Predicated region
    $region34: #{qnetwork_forward.1} parent=1 // pred_check
      _
    $region35: #{qnetwork_forward.1} parent=1 // pred_check_branch
      %65 = sbr.rel (0) target = $region37
    $region36: #{qnetwork_forward.1} parent=1 // pred_region
      %66 = dma.done [#allocation6], 2048
    $region37: #{qnetwork_forward.1} parent=1 // pred_fallthru
      _
    // Predicated region
    $region38: #{qnetwork_forward.1} parent=1 // pred_check
      _
    $region39: #{qnetwork_forward.1} parent=1 // pred_check_branch
      %68 = sbr.rel (0) target = $region41
    $region40: #{qnetwork_forward.1} parent=1 // pred_region
      %69 = dma.done [#allocation6], 2048
    $region41: #{qnetwork_forward.1} parent=1 // pred_fallthru
      _
    %v70 = vld [vmem:[%s0] sm:$0xff]
    %v71 = vld [vmem:[#allocation2] sm:$0xff]
    %v72 = vld [vmem:[#allocation2 + $0x8] sm:$0xff]
    %v73 = vld [vmem:[#allocation2 + $0x10] sm:$0xff]
    %v74 = vld [vmem:[#allocation2 + $0x18] sm:$0xff]
    %v75 = vld [vmem:[#allocation2 + $0x20] sm:$0xff]
    %v76 = vld [vmem:[#allocation2 + $0x28] sm:$0xff]
    %v77 = vld [vmem:[#allocation2 + $0x30] sm:$0xff]
    %v78 = vld [vmem:[#allocation2 + $0x38] sm:$0xff]
    %v79 = vld [vmem:[#allocation2 + $0x40] sm:$0xff]
    %v80 = vld [vmem:[#allocation2 + $0x48] sm:$0xff]
    %v81 = vld [vmem:[#allocation2 + $0x50] sm:$0xff]
    %v82 = vld [vmem:[#allocation2 + $0x58] sm:$0xff]
    %v83 = vld [vmem:[#allocation2 + $0x60] sm:$0xff]
    %v84 = vld [vmem:[#allocation2 + $0x68] sm:$0xff]
    %v85 = vld [vmem:[#allocation2 + $0x70] sm:$0xff]
    %v86 = vld [vmem:[#allocation2 + $0x78] sm:$0xff]
    %v87 = vld [vmem:[%s2] sm:$0x1]
    %v89 = vlaneseq
    %v90 = vshrl.u32 %v89, 7
    %v91 = vsub.s32 0, %v90
    %v92 = vrot.slane %v87, %v91
    %94 = vmatprep.subr.mxu0 0.0
    %95 = vmatpush1.msra.mxu0 %v71
    %96 = vmatprep.subr.mxu0 0.0
    %97 = vmatpush1.msra.mxu0 %v72
    %98 = vmatprep.subr.mxu0 0.0
    %99 = vmatpush1.msra.mxu0 %v73
    %100 = vmatprep.subr.mxu0 0.0
    %101 = vmatpush1.msra.mxu0 %v74
    %102 = vmatprep.subr.mxu0 0.0
    %103 = vmatpush1.msra.mxu0 %v75
    %104 = vmatprep.subr.mxu0 0.0
    %105 = vmatpush1.msra.mxu0 %v76
    %106 = vmatprep.subr.mxu0 0.0
    %107 = vmatpush1.msra.mxu0 %v77
    %108 = vmatprep.subr.mxu0 0.0
    %109 = vmatpush1.msra.mxu0 %v78
    %110 = vmatprep.subr.mxu0 0.0
    %111 = vmatpush1.msra.mxu0 %v79
    %112 = vmatprep.subr.mxu0 0.0
    %113 = vmatpush1.msra.mxu0 %v80
    %114 = vmatprep.subr.mxu0 0.0
    %115 = vmatpush1.msra.mxu0 %v81
    %116 = vmatprep.subr.mxu0 0.0
    %117 = vmatpush1.msra.mxu0 %v82
    %118 = vmatprep.subr.mxu0 0.0
    %119 = vmatpush1.msra.mxu0 %v83
    %120 = vmatprep.subr.mxu0 0.0
    %121 = vmatpush1.msra.mxu0 %v84
    %122 = vmatprep.subr.mxu0 0.0
    %123 = vmatpush1.msra.mxu0 %v85
    %124 = vmatprep.subr.mxu0 0.0
    %125 = vmatpush1.msra.mxu0 %v86
    %126 = vmatprep.subr.mxu0 0.0
    %127 = vmatpush1.msra.mxu0 0.0
    %128 = vmatprep.subr.mxu0 0.0
    %129 = vmatpush1.msra.mxu0 0.0
    %130 = vmatprep.subr.mxu0 0.0
    %131 = vmatpush1.msra.mxu0 0.0
    %132 = vmatprep.subr.mxu0 0.0
    %133 = vmatpush1.msra.mxu0 0.0
    %134 = vmatprep.subr.mxu0 0.0
    %135 = vmatpush1.msra.mxu0 0.0
    %136 = vmatprep.subr.mxu0 0.0
    %137 = vmatpush1.msra.mxu0 0.0
    %138 = vmatprep.subr.mxu0 0.0
    %139 = vmatpush1.msra.mxu0 0.0
    %140 = vmatprep.subr.mxu0 0.0
    %141 = vmatpush1.msra.mxu0 0.0
    %142 = vmatprep.subr.mxu0 0.0
    %143 = vmatpush1.msra.mxu0 0.0
    %144 = vmatprep.subr.mxu0 0.0
    %145 = vmatpush1.msra.mxu0 0.0
    %146 = vmatprep.subr.mxu0 0.0
    %147 = vmatpush1.msra.mxu0 0.0
    %148 = vmatprep.subr.mxu0 0.0
    %149 = vmatpush1.msra.mxu0 0.0
    %150 = vmatprep.subr.mxu0 0.0
    %151 = vmatpush1.msra.mxu0 0.0
    %152 = vmatprep.subr.mxu0 0.0
    %153 = vmatpush1.msra.mxu0 0.0
    %154 = vmatprep.subr.mxu0 0.0
    %155 = vmatpush1.msra.mxu0 0.0
    %156 = vmatprep.subr.mxu0 0.0
    %157 = vmatpush1.msra.mxu0 0.0
    %158 = vmatprep.mubr.f32.mxu0 0.0
    %159 = vmatmul.mubr.f32.gmra.mrb[0].mxu0 %v70
    %v160 = vpop.f32.mrb[0].mxu0
    %v161 = vadd.f32 %v92, %v160
    %v162 = vpop.f32.mrb[0].mxu0
    %163 = vdwg.mxu0
    %v164 = vmax.f32 %v161, 0.0
    %v165 = vmul.f32 %v164, %v164
    %166 = vadd.xlane.f32.xlu0 %v165
    %v167 = vpop.xlane.xlu0 %166
    %v168 = vmax.f32 %v167, 1e-24
    %v169 = vrsqrt.pop %v168
    %v170 = vmul.f32 %v164, %v169
    %171 = vst [vmem:[#allocation8] sm:$0xff] %v170
    %v172 = vld [vmem:[#allocation5] sm:$0xff]
    %v173 = vld [vmem:[#allocation5 + $0x8] sm:$0xff]
    %v174 = vld [vmem:[#allocation5 + $0x10] sm:$0xff]
    %v175 = vld [vmem:[#allocation5 + $0x18] sm:$0xff]
    %v176 = vld [vmem:[#allocation5 + $0x20] sm:$0xff]
    %v177 = vld [vmem:[#allocation5 + $0x28] sm:$0xff]
    %v178 = vld [vmem:[#allocation5 + $0x30] sm:$0xff]
    %v179 = vld [vmem:[#allocation5 + $0x38] sm:$0xff]
    %v180 = vld [vmem:[#allocation5 + $0x40] sm:$0xff]
    %v181 = vld [vmem:[#allocation5 + $0x48] sm:$0xff]
    %v182 = vld [vmem:[#allocation5 + $0x50] sm:$0xff]
    %v183 = vld [vmem:[#allocation5 + $0x58] sm:$0xff]
    %v184 = vld [vmem:[#allocation5 + $0x60] sm:$0xff]
    %v185 = vld [vmem:[#allocation5 + $0x68] sm:$0xff]
    %v186 = vld [vmem:[#allocation5 + $0x70] sm:$0xff]
    %v187 = vld [vmem:[#allocation5 + $0x78] sm:$0xff]
    %v188 = vld [vmem:[%s4] sm:$0x1]
    %v190 = vlaneseq
    %v191 = vshrl.u32 %v190, 7
    %v192 = vsub.s32 0, %v191
    %v193 = vrot.slane %v188, %v192
    %195 = vmatprep.subr.mxu0 0.0
    %196 = vmatpush1.msra.mxu0 %v172
    %197 = vmatprep.subr.mxu0 0.0
    %198 = vmatpush1.msra.mxu0 %v173
    %199 = vmatprep.subr.mxu0 0.0
    %200 = vmatpush1.msra.mxu0 %v174
    %201 = vmatprep.subr.mxu0 0.0
    %202 = vmatpush1.msra.mxu0 %v175
    %203 = vmatprep.subr.mxu0 0.0
    %204 = vmatpush1.msra.mxu0 %v176
    %205 = vmatprep.subr.mxu0 0.0
    %206 = vmatpush1.msra.mxu0 %v177
    %207 = vmatprep.subr.mxu0 0.0
    %208 = vmatpush1.msra.mxu0 %v178
    %209 = vmatprep.subr.mxu0 0.0
    %210 = vmatpush1.msra.mxu0 %v179
    %211 = vmatprep.subr.mxu0 0.0
    %212 = vmatpush1.msra.mxu0 %v180
    %213 = vmatprep.subr.mxu0 0.0
    %214 = vmatpush1.msra.mxu0 %v181
    %215 = vmatprep.subr.mxu0 0.0
    %216 = vmatpush1.msra.mxu0 %v182
    %217 = vmatprep.subr.mxu0 0.0
    %218 = vmatpush1.msra.mxu0 %v183
    %219 = vmatprep.subr.mxu0 0.0
    %220 = vmatpush1.msra.mxu0 %v184
    %221 = vmatprep.subr.mxu0 0.0
    %222 = vmatpush1.msra.mxu0 %v185
    %223 = vmatprep.subr.mxu0 0.0
    %224 = vmatpush1.msra.mxu0 %v186
    %225 = vmatprep.subr.mxu0 0.0
    %226 = vmatpush1.msra.mxu0 %v187
    %227 = vmatprep.subr.mxu0 0.0
    %228 = vmatpush1.msra.mxu0 0.0
    %229 = vmatprep.subr.mxu0 0.0
    %230 = vmatpush1.msra.mxu0 0.0
    %231 = vmatprep.subr.mxu0 0.0
    %232 = vmatpush1.msra.mxu0 0.0
    %233 = vmatprep.subr.mxu0 0.0
    %234 = vmatpush1.msra.mxu0 0.0
    %235 = vmatprep.subr.mxu0 0.0
    %236 = vmatpush1.msra.mxu0 0.0
    %237 = vmatprep.subr.mxu0 0.0
    %238 = vmatpush1.msra.mxu0 0.0
    %239 = vmatprep.subr.mxu0 0.0
    %240 = vmatpush1.msra.mxu0 0.0
    %241 = vmatprep.subr.mxu0 0.0
    %242 = vmatpush1.msra.mxu0 0.0
    %243 = vmatprep.subr.mxu0 0.0
    %244 = vmatpush1.msra.mxu0 0.0
    %245 = vmatprep.subr.mxu0 0.0
    %246 = vmatpush1.msra.mxu0 0.0
    %247 = vmatprep.subr.mxu0 0.0
    %248 = vmatpush1.msra.mxu0 0.0
    %249 = vmatprep.subr.mxu0 0.0
    %250 = vmatpush1.msra.mxu0 0.0
    %251 = vmatprep.subr.mxu0 0.0
    %252 = vmatpush1.msra.mxu0 0.0
    %253 = vmatprep.subr.mxu0 0.0
    %254 = vmatpush1.msra.mxu0 0.0
    %255 = vmatprep.subr.mxu0 0.0
    %256 = vmatpush1.msra.mxu0 0.0
    %257 = vmatprep.subr.mxu0 0.0
    %258 = vmatpush1.msra.mxu0 0.0
    %259 = vmatprep.mubr.f32.mxu0 0.0
    %260 = vmatmul.mubr.f32.gmra.mrb[0].mxu0 %v170
    %v261 = vpop.f32.mrb[0].mxu0
    %v262 = vadd.f32 %v193, %v261
    %v263 = vpop.f32.mrb[0].mxu0
    %264 = vdwg.mxu0
    %v265 = vmax.f32 %v262, 0.0
    %v266 = vld [vmem:[#allocation7] sm:$0xff]
    %v267 = vld [vmem:[#allocation7 + $0x8] sm:$0xff]
    %v268 = vld [vmem:[#allocation7 + $0x10] sm:$0xff]
    %v269 = vld [vmem:[#allocation7 + $0x18] sm:$0xff]
    %v270 = vld [vmem:[#allocation7 + $0x20] sm:$0xff]
    %v271 = vld [vmem:[#allocation7 + $0x28] sm:$0xff]
    %v272 = vld [vmem:[#allocation7 + $0x30] sm:$0xff]
    %v273 = vld [vmem:[#allocation7 + $0x38] sm:$0xff]
    %v274 = vld [vmem:[#allocation7 + $0x40] sm:$0xff]
    %v275 = vld [vmem:[#allocation7 + $0x48] sm:$0xff]
    %v276 = vld [vmem:[#allocation7 + $0x50] sm:$0xff]
    %v277 = vld [vmem:[#allocation7 + $0x58] sm:$0xff]
    %v278 = vld [vmem:[#allocation7 + $0x60] sm:$0xff]
    %v279 = vld [vmem:[#allocation7 + $0x68] sm:$0xff]
    %v280 = vld [vmem:[#allocation7 + $0x70] sm:$0xff]
    %v281 = vld [vmem:[#allocation7 + $0x78] sm:$0xff]
    %v282 = vld [vmem:[%s6] sm:$0x1]
    %v284 = vlaneseq
    %v285 = vshrl.u32 %v284, 7
    %v286 = vsub.s32 0, %v285
    %v287 = vrot.slane %v282, %v286
    %289 = vmatprep.subr.mxu0 0.0
    %290 = vmatpush1.msra.mxu0 %v266
    %291 = vmatprep.subr.mxu0 0.0
    %292 = vmatpush1.msra.mxu0 %v267
    %293 = vmatprep.subr.mxu0 0.0
    %294 = vmatpush1.msra.mxu0 %v268
    %295 = vmatprep.subr.mxu0 0.0
    %296 = vmatpush1.msra.mxu0 %v269
    %297 = vmatprep.subr.mxu0 0.0
    %298 = vmatpush1.msra.mxu0 %v270
    %299 = vmatprep.subr.mxu0 0.0
    %300 = vmatpush1.msra.mxu0 %v271
    %301 = vmatprep.subr.mxu0 0.0
    %302 = vmatpush1.msra.mxu0 %v272
    %303 = vmatprep.subr.mxu0 0.0
    %304 = vmatpush1.msra.mxu0 %v273
    %305 = vmatprep.subr.mxu0 0.0
    %306 = vmatpush1.msra.mxu0 %v274
    %307 = vmatprep.subr.mxu0 0.0
    %308 = vmatpush1.msra.mxu0 %v275
    %309 = vmatprep.subr.mxu0 0.0
    %310 = vmatpush1.msra.mxu0 %v276
    %311 = vmatprep.subr.mxu0 0.0
    %312 = vmatpush1.msra.mxu0 %v277
    %313 = vmatprep.subr.mxu0 0.0
    %314 = vmatpush1.msra.mxu0 %v278
    %315 = vmatprep.subr.mxu0 0.0
    %316 = vmatpush1.msra.mxu0 %v279
    %317 = vmatprep.subr.mxu0 0.0
    %318 = vmatpush1.msra.mxu0 %v280
    %319 = vmatprep.subr.mxu0 0.0
    %320 = vmatpush1.msra.mxu0 %v281
    %321 = vmatprep.subr.mxu0 0.0
    %322 = vmatpush1.msra.mxu0 0.0
    %323 = vmatprep.subr.mxu0 0.0
    %324 = vmatpush1.msra.mxu0 0.0
    %325 = vmatprep.subr.mxu0 0.0
    %326 = vmatpush1.msra.mxu0 0.0
    %327 = vmatprep.subr.mxu0 0.0
    %328 = vmatpush1.msra.mxu0 0.0
    %329 = vmatprep.subr.mxu0 0.0
    %330 = vmatpush1.msra.mxu0 0.0
    %331 = vmatprep.subr.mxu0 0.0
    %332 = vmatpush1.msra.mxu0 0.0
    %333 = vmatprep.subr.mxu0 0.0
    %334 = vmatpush1.msra.mxu0 0.0
    %335 = vmatprep.subr.mxu0 0.0
    %336 = vmatpush1.msra.mxu0 0.0
    %337 = vmatprep.subr.mxu0 0.0
    %338 = vmatpush1.msra.mxu0 0.0
    %339 = vmatprep.subr.mxu0 0.0
    %340 = vmatpush1.msra.mxu0 0.0
    %341 = vmatprep.subr.mxu0 0.0
    %342 = vmatpush1.msra.mxu0 0.0
    %343 = vmatprep.subr.mxu0 0.0
    %344 = vmatpush1.msra.mxu0 0.0
    %345 = vmatprep.subr.mxu0 0.0
    %346 = vmatpush1.msra.mxu0 0.0
    %347 = vmatprep.subr.mxu0 0.0
    %348 = vmatpush1.msra.mxu0 0.0
    %349 = vmatprep.subr.mxu0 0.0
    %350 = vmatpush1.msra.mxu0 0.0
    %351 = vmatprep.subr.mxu0 0.0
    %352 = vmatpush1.msra.mxu0 0.0
    %353 = vmatprep.mubr.f32.mxu0 0.0
    %354 = vmatmul.mubr.f32.gmra.mrb[0].mxu0 %v265
    %v355 = vpop.f32.mrb[0].mxu0
    %v356 = vadd.f32 %v287, %v355
    %v357 = vpop.f32.mrb[0].mxu0
    %358 = vdwg.mxu0
    %359 = vst [vmem:[%s8] sm:$0xff] %v356
    // Predicated region
    $region42: #{qnetwork_forward.1} parent=1 // pred_check
      _
    $region43: #{qnetwork_forward.1} parent=1 // pred_check_branch
      %361 = sbr.rel (0) target = $region45
    $region44: #{qnetwork_forward.1} parent=1 // pred_region
      %s363 = ssub.s32 128, 128
      %364 = vsyncadd [#allocation4], %s363
      %s366 = sshll.u32 [#allocation8], 4
      %s367 = int_to_ptr.vmem [resolvable:$true] %s366
      %369 = dma.vmem_to_hbm [thread:$0]  %s367, 128, %s7, [#allocation4]
    $region45: #{qnetwork_forward.1} parent=1 // pred_fallthru
      _
    // Predicated region
    $region46: #{qnetwork_forward.1} parent=1 // pred_check
      _
    $region47: #{qnetwork_forward.1} parent=1 // pred_check_branch
      %371 = sbr.rel (0) target = $region49
    $region48: #{qnetwork_forward.1} parent=1 // pred_region
      _
    $region49: #{qnetwork_forward.1} parent=1 // pred_fallthru
      _
    // Predicated region
    $region50: #{qnetwork_forward.1} parent=1 // pred_check
      _
    $region51: #{qnetwork_forward.1} parent=1 // pred_check_branch
      %373 = sbr.rel (0) target = $region53
    $region52: #{qnetwork_forward.1} parent=1 // pred_region
      %374 = dma.done [#allocation4], 128
    $region53: #{qnetwork_forward.1} parent=1 // pred_fallthru
      _
    // Predicated region
    $region54: #{qnetwork_forward.1} parent=1 // pred_check
      _
    $region55: #{qnetwork_forward.1} parent=1 // pred_check_branch
      %376 = sbr.rel (0) target = $region57
    $region56: #{qnetwork_forward.1} parent=1 // pred_region
      _
    $region57: #{qnetwork_forward.1} parent=1 // pred_fallthru
      _
    %377 = vsyncpa [#allocation3], 1
    %378 = vsyncpa [#allocation6], 1
    %379 = vsyncpa [#allocation4], 1

</llo_original>
